<compile_context>
chip_gen: v5e
topology: v5e:2x2
jax: 0.10.0
libtpu: 0.0.40
codegen_flags: <defaults>
</compile_context>

<pallas_src>
import jax
import jax.numpy as jnp
from jax.experimental import pallas as pl
from jax.experimental.pallas import tpu as pltpu


def _round_up(x, m):
    return ((x + m - 1) // m) * m


def sac_policy_kernel(
    s_ref,    # [B_TILE, state_dim]       f32
    w1_ref,   # [state_dim, hidden]       f32 or bf16
    b1_ref,   # [1, hidden]               f32
    w2_ref,   # [hidden, hidden]          f32 or bf16
    b2_ref,   # [1, hidden]               f32
    wh_ref,   # [hidden, 2*action_dim]    f32 or bf16  (mean | log_std fused)
    bh_ref,   # [1, 2*action_dim]         f32
    out_ref,  # [B_TILE, 2*action_dim]    f32          (mean | std fused)
):
    x = s_ref[...]

    # linear1 + relu  (weight-dtype MXU operands, f32 accumulate, f32 elementwise)
    h = jnp.dot(x.astype(w1_ref.dtype), w1_ref[...],
                preferred_element_type=jnp.float32) + b1_ref[...]
    h = jnp.maximum(h, 0.0)

    # linear2 + relu
    h = jnp.dot(h.astype(w2_ref.dtype), w2_ref[...],
                preferred_element_type=jnp.float32) + b2_ref[...]
    h = jnp.maximum(h, 0.0)

    # fused heads: one matmul producing [mean | log_std]
    heads = jnp.dot(h.astype(wh_ref.dtype), wh_ref[...],
                    preferred_element_type=jnp.float32) + bh_ref[...]

    # Columns >= A carry log_std -> clamp + exp; columns < A carry mean and are
    # passed through untouched. A lane mask avoids a non-128-aligned lane slice.
    a_dim = out_ref.shape[-1] // 2
    col = jax.lax.broadcasted_iota(jnp.int32, heads.shape, dimension=1)
    std_all = jnp.exp(jnp.clip(heads, -20.0, 2.0))   # clamp bounds => exp never overflows
    out_ref[...] = jnp.where(col >= a_dim, std_all, heads).astype(out_ref.dtype)

    # TODO(synk): SAC `sample()` (eps via pltpu.prng_random_bits, tanh squash,
    # tanh-corrected log-prob) could be fused here too; forward() only returns
    # (mean, std), so it is intentionally not implemented.


def sac_policy_forward(state, params, *, b_tile=None):
    """state: [B, state_dim] f32.

    params: dict with
      w1 [S,H], b1 [1,H], w2 [H,H], b2 [1,H],
      wh [H, 2*A] (= concat(Wm, Wls, axis=1)), bh [1, 2*A].
    Weights may be f32 or bf16; biases are f32.
    Returns (mean [B, A] f32, std [B, A] f32).
    """
    B, S = state.shape
    H = params["w1"].shape[1]
    A2 = params["wh"].shape[1]
    A = A2 // 2

    state = state.astype(jnp.float32)

    # Batch tile: multiple of 8 sublanes.  Capped so the double-buffered state /
    # output tiles plus the resident weights and the [B_TILE, H] intermediate
    # stay far below the default scoped-VMEM limit on every generation
    # (v5e 16 MiB default, v7x 32/64 MiB).
    if b_tile is None:
        b_tile = min(512, _round_up(B, 8))
    b_tile = max(8, _round_up(b_tile, 8))
    b_pad = _round_up(B, b_tile)
    if b_pad != B:
        state = jnp.pad(state, ((0, b_pad - B), (0, 0)))

    grid = (b_pad // b_tile,)

    in_specs = [
        pl.BlockSpec((b_tile, S), lambda i: (i, 0)),   # state: tiled over batch
        pl.BlockSpec((S, H), lambda i: (0, 0)),        # weights/biases: VMEM-resident
        pl.BlockSpec((1, H), lambda i: (0, 0)),
        pl.BlockSpec((H, H), lambda i: (0, 0)),
        pl.BlockSpec((1, H), lambda i: (0, 0)),
        pl.BlockSpec((H, A2), lambda i: (0, 0)),
        pl.BlockSpec((1, A2), lambda i: (0, 0)),
    ]
    out_specs = pl.BlockSpec((b_tile, A2), lambda i: (i, 0))
    out_shape = jax.ShapeDtypeStruct((b_pad, A2), jnp.float32)

    param_bytes = sum(int(p.size) * p.dtype.itemsize for p in params.values())
    cost = pl.CostEstimate(
        flops=2 * b_pad * (S * H + H * H + H * A2),
        transcendentals=b_pad * A2,
        bytes_accessed=int(state.size) * 4 + param_bytes + int(b_pad) * A2 * 4,
    )

    heads = pl.pallas_call(
        sac_policy_kernel,
        out_shape=out_shape,
        grid=grid,
        in_specs=in_specs,
        out_specs=out_specs,
        compiler_params=pltpu.CompilerParams(
            dimension_semantics=("parallel",),
        ),
        cost_estimate=cost,
    )(state, params["w1"], params["b1"], params["w2"], params["b2"],
      params["wh"], params["bh"])

    mean = heads[:B, :A]
    std = heads[:B, A:]
    return mean, std


def init_raw_params(key, state_dim, action_dim, hidden_dim):
    """PyTorch-style nn.Linear init; weights stored transposed as [in, out]."""
    ks = jax.random.split(key, 8)

    def lin(kw, kb, fan_in, fan_out):
        bound = 1.0 / jnp.sqrt(jnp.float32(fan_in))
        w = jax.random.uniform(kw, (fan_in, fan_out), jnp.float32, -bound, bound)
        b = jax.random.uniform(kb, (1, fan_out), jnp.float32, -bound, bound)
        return w, b

    w1, b1 = lin(ks[0], ks[1], state_dim, hidden_dim)
    w2, b2 = lin(ks[2], ks[3], hidden_dim, hidden_dim)
    wm, bm = lin(ks[4], ks[5], hidden_dim, action_dim)
    wls, bls = lin(ks[6], ks[7], hidden_dim, action_dim)
    return dict(w1=w1, b1=b1, w2=w2, b2=b2, wm=wm, bm=bm, wls=wls, bls=bls)


def pack_kernel_params(raw, weight_dtype=jnp.bfloat16):
    """Fuse the mean/log_std heads and cast matmul weights (biases stay f32)."""
    wh = jnp.concatenate([raw["wm"], raw["wls"]], axis=1)   # (mean | log_std)
    bh = jnp.concatenate([raw["bm"], raw["bls"]], axis=1)
    return dict(
        w1=raw["w1"].astype(weight_dtype),
        b1=raw["b1"].astype(jnp.float32),
        w2=raw["w2"].astype(weight_dtype),
        b2=raw["b2"].astype(jnp.float32),
        wh=wh.astype(weight_dtype),
        bh=bh.astype(jnp.float32),
    )


def reference_forward(state, raw):
    """Pure-JAX f32 reference matching the PyTorch module exactly."""
    h = jnp.maximum(state @ raw["w1"] + raw["b1"], 0.0)
    h = jnp.maximum(h @ raw["w2"] + raw["b2"], 0.0)
    mean = h @ raw["wm"] + raw["bm"]
    log_std = jnp.clip(h @ raw["wls"] + raw["bls"], -20.0, 2.0)
    return mean, jnp.exp(log_std)


if __name__ == "__main__":
    batch = 2
    state_dim = 8
    action_dim = 4
    hidden_dim = 32   # small hidden size for the demo (module default is 256)

    key = jax.random.PRNGKey(0)
    k_state, k_params = jax.random.split(key)

    state = jax.random.normal(k_state, (batch, state_dim), dtype=jnp.float32)
    raw = init_raw_params(k_params, state_dim, action_dim, hidden_dim)
    ref_mean, ref_std = reference_forward(state, raw)

    # f32 weights: exact semantics, tight tolerance.
    mean32, std32 = jax.block_until_ready(
        sac_policy_forward(state, pack_kernel_params(raw, jnp.float32)))
    assert mean32.shape == (batch, action_dim) and std32.shape == (batch, action_dim)
    assert jnp.allclose(mean32, ref_mean, atol=1e-5, rtol=1e-5), "f32 mean mismatch"
    assert jnp.allclose(std32, ref_std, atol=1e-5, rtol=1e-5), "f32 std mismatch"

    # bf16 weights (MXU fast path on v6e/v7x): f32 accumulation, looser tolerance.
    mean16, std16 = jax.block_until_ready(
        sac_policy_forward(state, pack_kernel_params(raw, jnp.bfloat16)))
    assert jnp.allclose(mean16, ref_mean, atol=5e-2, rtol=5e-2), "bf16 mean mismatch"
    assert jnp.allclose(std16, ref_std, atol=5e-2, rtol=5e-2), "bf16 std mismatch"

    assert jnp.all(std32 > 0.0) and jnp.all(std16 > 0.0), "std must be positive"

    print("KERNEL_OK")
</pallas_src>

<mosaic_0001>
module attributes {stable_mosaic.version = 11 : i64} {
  func.func @sac_policy_kernel(%arg0: i32, %arg1: memref<8x8xf32, #tpu.memory_space<vmem>>, %arg2: memref<8x32xf32, #tpu.memory_space<vmem>>, %arg3: memref<1x32xf32, #tpu.memory_space<vmem>>, %arg4: memref<32x32xf32, #tpu.memory_space<vmem>>, %arg5: memref<1x32xf32, #tpu.memory_space<vmem>>, %arg6: memref<32x8xf32, #tpu.memory_space<vmem>>, %arg7: memref<1x8xf32, #tpu.memory_space<vmem>>, %arg8: memref<8x8xf32, #tpu.memory_space<vmem>>) attributes {dimension_semantics = [#tpu.dimension_semantics<parallel>], iteration_bounds = array<i64: 1>, scalar_prefetch = 0 : i64, scratch_operands = 0 : i64, tpu.core_type = #tpu.core_type<tc>, window_params = [{transform_indices = @transform_0, window_bounds = array<i64: 8, 8>}, {pipeline_mode = #tpu.pipeline_mode<synchronous>, transform_indices = @transform_1, window_bounds = array<i64: 8, 32>}, {pipeline_mode = #tpu.pipeline_mode<synchronous>, transform_indices = @transform_2, window_bounds = array<i64: 1, 32>}, {pipeline_mode = #tpu.pipeline_mode<synchronous>, transform_indices = @transform_3, window_bounds = array<i64: 32, 32>}, {pipeline_mode = #tpu.pipeline_mode<synchronous>, transform_indices = @transform_4, window_bounds = array<i64: 1, 32>}, {pipeline_mode = #tpu.pipeline_mode<synchronous>, transform_indices = @transform_5, window_bounds = array<i64: 32, 8>}, {pipeline_mode = #tpu.pipeline_mode<synchronous>, transform_indices = @transform_6, window_bounds = array<i64: 1, 8>}, {transform_indices = @transform_7, window_bounds = array<i64: 8, 8>}]} {
    %c0 = arith.constant 0 : index
    %c0_0 = arith.constant 0 : index
    %0 = vector.load %arg1[%c0, %c0_0] : memref<8x8xf32, #tpu.memory_space<vmem>>, vector<8x8xf32>
    %c0_1 = arith.constant 0 : index
    %c0_2 = arith.constant 0 : index
    %1 = vector.load %arg2[%c0_1, %c0_2] : memref<8x32xf32, #tpu.memory_space<vmem>>, vector<8x32xf32>
    %cst = arith.constant dense<0.000000e+00> : vector<8x32xf32>
    %2 = tpu.matmul %0, %1, %cst {dimension_numbers = #tpu.dot_dimension_numbers<[1], [0], [0], [1], [0, 0, 1, 1], [], []>} : vector<8x8xf32>, vector<8x32xf32>, vector<8x32xf32> -> vector<8x32xf32>
    %c0_3 = arith.constant 0 : index
    %c0_4 = arith.constant 0 : index
    %3 = vector.load %arg3[%c0_3, %c0_4] : memref<1x32xf32, #tpu.memory_space<vmem>>, vector<1x32xf32>
    %4 = vector.broadcast %3 : vector<1x32xf32> to vector<8x32xf32>
    %5 = arith.addf %2, %4 : vector<8x32xf32>
    %cst_5 = arith.constant 0.000000e+00 : f32
    %6 = vector.broadcast %cst_5 : f32 to vector<8x32xf32>
    %7 = arith.maximumf %5, %6 : vector<8x32xf32>
    %c0_6 = arith.constant 0 : index
    %c0_7 = arith.constant 0 : index
    %8 = vector.load %arg4[%c0_6, %c0_7] : memref<32x32xf32, #tpu.memory_space<vmem>>, vector<32x32xf32>
    %cst_8 = arith.constant dense<0.000000e+00> : vector<8x32xf32>
    %9 = tpu.matmul %7, %8, %cst_8 {dimension_numbers = #tpu.dot_dimension_numbers<[1], [0], [0], [1], [0, 0, 1, 1], [], []>} : vector<8x32xf32>, vector<32x32xf32>, vector<8x32xf32> -> vector<8x32xf32>
    %c0_9 = arith.constant 0 : index
    %c0_10 = arith.constant 0 : index
    %10 = vector.load %arg5[%c0_9, %c0_10] : memref<1x32xf32, #tpu.memory_space<vmem>>, vector<1x32xf32>
    %11 = vector.broadcast %10 : vector<1x32xf32> to vector<8x32xf32>
    %12 = arith.addf %9, %11 : vector<8x32xf32>
    %cst_11 = arith.constant 0.000000e+00 : f32
    %13 = vector.broadcast %cst_11 : f32 to vector<8x32xf32>
    %14 = arith.maximumf %12, %13 : vector<8x32xf32>
    %c0_12 = arith.constant 0 : index
    %c0_13 = arith.constant 0 : index
    %15 = vector.load %arg6[%c0_12, %c0_13] : memref<32x8xf32, #tpu.memory_space<vmem>>, vector<32x8xf32>
    %cst_14 = arith.constant dense<0.000000e+00> : vector<8x8xf32>
    %16 = tpu.matmul %14, %15, %cst_14 {dimension_numbers = #tpu.dot_dimension_numbers<[1], [0], [0], [1], [0, 0, 1, 1], [], []>} : vector<8x32xf32>, vector<32x8xf32>, vector<8x8xf32> -> vector<8x8xf32>
    %c0_15 = arith.constant 0 : index
    %c0_16 = arith.constant 0 : index
    %17 = vector.load %arg7[%c0_15, %c0_16] : memref<1x8xf32, #tpu.memory_space<vmem>>, vector<1x8xf32>
    %18 = vector.broadcast %17 : vector<1x8xf32> to vector<8x8xf32>
    %19 = arith.addf %16, %18 : vector<8x8xf32>
    %20 = tpu.iota {dimensions = array<i32: 1>} : vector<8x8xi32>
    %cst_17 = arith.constant -2.000000e+01 : f32
    %cst_18 = arith.constant 2.000000e+00 : f32
    %21 = vector.broadcast %cst_17 : f32 to vector<8x8xf32>
    %22 = arith.maximumf %21, %19 : vector<8x8xf32>
    %23 = vector.broadcast %cst_18 : f32 to vector<8x8xf32>
    %24 = arith.minimumf %23, %22 : vector<8x8xf32>
    %25 = math.exp %24 : vector<8x8xf32>
    %c4_i32 = arith.constant 4 : i32
    %26 = vector.broadcast %c4_i32 : i32 to vector<8x8xi32>
    %27 = arith.cmpi sge, %20, %26 : vector<8x8xi32>
    %28 = arith.select %27, %25, %19 : vector<8x8xi1>, vector<8x8xf32>
    %c0_19 = arith.constant 0 : index
    %c0_20 = arith.constant 0 : index
    %29 = vector.load %arg8[%c0_19, %c0_20] : memref<8x8xf32, #tpu.memory_space<vmem>>, vector<8x8xf32>
    tpu.vector_store %arg8[%c0_19, %c0_20], %28 {strides = array<i32>} : memref<8x8xf32, #tpu.memory_space<vmem>>, vector<8x8xf32>,
    return
  }
  func.func @transform_0(%arg0: i32) -> (i32, i32) {
    %c0_i32 = arith.constant 0 : i32
    %c0_i32_0 = arith.constant 0 : i32
    return %arg0, %c0_i32 : i32, i32
  }
  func.func @transform_1(%arg0: i32) -> (i32, i32) {
    %c0_i32 = arith.constant 0 : i32
    %c0_i32_0 = arith.constant 0 : i32
    %c0_i32_1 = arith.constant 0 : i32
    return %c0_i32, %c0_i32_0 : i32, i32
  }
  func.func @transform_2(%arg0: i32) -> (i32, i32) {
    %c0_i32 = arith.constant 0 : i32
    %c0_i32_0 = arith.constant 0 : i32
    %c0_i32_1 = arith.constant 0 : i32
    return %c0_i32, %c0_i32_0 : i32, i32
  }
  func.func @transform_3(%arg0: i32) -> (i32, i32) {
    %c0_i32 = arith.constant 0 : i32
    %c0_i32_0 = arith.constant 0 : i32
    %c0_i32_1 = arith.constant 0 : i32
    return %c0_i32, %c0_i32_0 : i32, i32
  }
  func.func @transform_4(%arg0: i32) -> (i32, i32) {
    %c0_i32 = arith.constant 0 : i32
    %c0_i32_0 = arith.constant 0 : i32
    %c0_i32_1 = arith.constant 0 : i32
    return %c0_i32, %c0_i32_0 : i32, i32
  }
  func.func @transform_5(%arg0: i32) -> (i32, i32) {
    %c0_i32 = arith.constant 0 : i32
    %c0_i32_0 = arith.constant 0 : i32
    %c0_i32_1 = arith.constant 0 : i32
    return %c0_i32, %c0_i32_0 : i32, i32
  }
  func.func @transform_6(%arg0: i32) -> (i32, i32) {
    %c0_i32 = arith.constant 0 : i32
    %c0_i32_0 = arith.constant 0 : i32
    %c0_i32_1 = arith.constant 0 : i32
    return %c0_i32, %c0_i32_0 : i32, i32
  }
  func.func @transform_7(%arg0: i32) -> (i32, i32) {
    %c0_i32 = arith.constant 0 : i32
    %c0_i32_0 = arith.constant 0 : i32
    return %arg0, %c0_i32 : i32, i32
  }
}

</mosaic_0001>

<llo_original>
// kernel: tpu_custom_call.1
$region0: #{tpu_custom_call.1}
  #allocation0 [shape = 'u32[]', space=smem, size = 0x4, offset = 0x4, fixed_abs, tag = 'smem constant byte address 0x4 - core index']
  #allocation1 [shape = 'u32[72,128]{1,0:T(1,128)}', space=vmem, size = 0x9000, scoped, tag = 'internal scratch']
  %s0 = inlined_call_operand.vmem [shape: f32[8,8], index: 0, kind: input, shape index: {}]
  %s1 = inlined_call_operand.hbm [shape: f32[8,32], index: 1, kind: input, shape index: {}]
  %s2 = inlined_call_operand.vmem [shape: f32[1,32], index: 2, kind: input, shape index: {}]
  %s3 = inlined_call_operand.vmem [shape: f32[32,32], index: 3, kind: input, shape index: {}]
  %s4 = inlined_call_operand.vmem [shape: f32[1,32], index: 4, kind: input, shape index: {}]
  %s5 = inlined_call_operand.vmem [shape: f32[32,8], index: 5, kind: input, shape index: {}]
  %s6 = inlined_call_operand.vmem [shape: f32[1,8], index: 6, kind: input, shape index: {}]
  %s7 = inlined_call_operand.hbm [shape: f32[8,8], index: 7, kind: output, shape index: {}]
  %s8 = sld [smem:[#allocation0]]
  $region42: #{tpu_custom_call.1} parent=0
    _
  %s10 = ssub.s32 1, %s8
  %s11 = scalar_select 0, %s10, %s8
  $region1: #{tpu_custom_call.1} parent=0
    #allocation2 [shape = 'u8[4096]{0}', space=vmem, size = 0x1000, scoped, tag = 'input window, operand 1, single buffered']
    #allocation3 [shape = 's32[1]{0}', space=sflag, size = 0x4, scoped, tag = 'scoped memory for tpu_custom_call.1']
    #allocation4 [shape = 's32[1]{0}', space=sflag, size = 0x4, scoped, tag = 'scoped memory for tpu_custom_call.1']
    #allocation5 [shape = 'u8[4096]{0}', space=vmem, size = 0x1000, scoped, tag = 'output window, operand 0, single buffered']
    %12 = vsyncpa [#allocation3], 0
    %13 = vsyncpa [#allocation4], 0
    // Predicated region
    $region2: #{tpu_custom_call.1} parent=1 // pred_check
      _
    $region3: #{tpu_custom_call.1} parent=1 // pred_check_branch
      %15 = sbr.rel (0) target = $region5
    $region4: #{tpu_custom_call.1} parent=1 // pred_region
      _
    $region5: #{tpu_custom_call.1} parent=1 // pred_fallthru
      _
    // Predicated region
    $region6: #{tpu_custom_call.1} parent=1 // pred_check
      _
    $region7: #{tpu_custom_call.1} parent=1 // pred_check_branch
      %17 = sbr.rel (0) target = $region9
    $region8: #{tpu_custom_call.1} parent=1 // pred_region
      %19 = vsyncadd [#allocation3], 0
      %s21 = sshll.u32 %s1, 4
      %s22 = int_to_ptr.hbm [resolvable:$true] %s21
      %s23 = sshll.u32 [#allocation2], 4
      %s24 = int_to_ptr.vmem [resolvable:$true] %s23
      %26 = dma.hbm_to_vmem [thread:$0]  %s22, 128, %s24, [#allocation3]
    $region9: #{tpu_custom_call.1} parent=1 // pred_fallthru
      _
    // Predicated region
    $region10: #{tpu_custom_call.1} parent=1 // pred_check
      _
    $region11: #{tpu_custom_call.1} parent=1 // pred_check_branch
      %28 = sbr.rel (0) target = $region13
    $region12: #{tpu_custom_call.1} parent=1 // pred_region
      _
    $region13: #{tpu_custom_call.1} parent=1 // pred_fallthru
      _
    // Predicated region
    $region14: #{tpu_custom_call.1} parent=1 // pred_check
      _
    $region15: #{tpu_custom_call.1} parent=1 // pred_check_branch
      %30 = sbr.rel (0) target = $region17
    $region16: #{tpu_custom_call.1} parent=1 // pred_region
      _
    $region17: #{tpu_custom_call.1} parent=1 // pred_fallthru
      _
    // Predicated region
    $region18: #{tpu_custom_call.1} parent=1 // pred_check
      _
    $region19: #{tpu_custom_call.1} parent=1 // pred_check_branch
      %32 = sbr.rel (0) target = $region21
    $region20: #{tpu_custom_call.1} parent=1 // pred_region
      _
    $region21: #{tpu_custom_call.1} parent=1 // pred_fallthru
      _
    // Predicated region
    $region22: #{tpu_custom_call.1} parent=1 // pred_check
      _
    $region23: #{tpu_custom_call.1} parent=1 // pred_check_branch
      %34 = sbr.rel (0) target = $region25
    $region24: #{tpu_custom_call.1} parent=1 // pred_region
      _
    $region25: #{tpu_custom_call.1} parent=1 // pred_fallthru
      _
    // Predicated region
    $region26: #{tpu_custom_call.1} parent=1 // pred_check
      _
    $region27: #{tpu_custom_call.1} parent=1 // pred_check_branch
      %36 = sbr.rel (0) target = $region29
    $region28: #{tpu_custom_call.1} parent=1 // pred_region
      _
    $region29: #{tpu_custom_call.1} parent=1 // pred_fallthru
      _
    // Predicated region
    $region30: #{tpu_custom_call.1} parent=1 // pred_check
      _
    $region31: #{tpu_custom_call.1} parent=1 // pred_check_branch
      %38 = sbr.rel (0) target = $region33
    $region32: #{tpu_custom_call.1} parent=1 // pred_region
      %40 = dma.done [#allocation3], 128
    $region33: #{tpu_custom_call.1} parent=1 // pred_fallthru
      _
    %v41 = vld [vmem:[%s0] sm:$0xff]
    %v42 = vld [vmem:[#allocation2] sm:$0xff]
    %v43 = vld [vmem:[%s2] sm:$0x1]
    %v45 = vperm.slane %v43, 0
    %vm47 = vcmask 64512
    %v49 = vsel %vm47, %v41, 0
    %51 = vmatpush.msra.mxu0 0.0
    %52 = vmatpush.msra.mxu0 0.0
    %53 = vmatpush.msra.mxu0 0.0
    %54 = vmatpush.msra.mxu0 0.0
    %55 = vmatpush.msra.mxu0 0.0
    %56 = vmatpush.msra.mxu0 0.0
    %57 = vmatpush.msra.mxu0 0.0
    %58 = vmatpush.msra.mxu0 0.0
    %59 = vmatpush.msra.mxu0 0.0
    %60 = vmatpush.msra.mxu0 0.0
    %61 = vmatpush.msra.mxu0 0.0
    %62 = vmatpush.msra.mxu0 0.0
    %63 = vmatpush.msra.mxu0 0.0
    %64 = vmatpush.msra.mxu0 0.0
    %65 = vmatpush.msra.mxu0 0.0
    %66 = vmatpush.msra.mxu0 %v42
    %67 = vmatmul.f32.gmra.mxu0 %v49
    %v68 = vpop.f32.mrf.mxu0
    %v69 = vadd.f32 %v45, %v68
    %70 = vdwg.mxu0
    %v71 = vmax.f32 %v69, 0.0
    %v72 = vld [vmem:[%s3] sm:$0xff]
    %v73 = vld [vmem:[%s3 + $0x8] sm:$0xff]
    %v74 = vld [vmem:[%s3 + $0x10] sm:$0xff]
    %v75 = vld [vmem:[%s3 + $0x18] sm:$0xff]
    %v76 = vld [vmem:[%s4] sm:$0x1]
    %v78 = vperm.slane %v76, 0
    %vm80 = vcmask 261120
    %v82 = vsel %vm80, %v71, 0
    %84 = vmatpush.msra.mxu0 0.0
    %85 = vmatpush.msra.mxu0 0.0
    %86 = vmatpush.msra.mxu0 0.0
    %87 = vmatpush.msra.mxu0 0.0
    %88 = vmatpush.msra.mxu0 0.0
    %89 = vmatpush.msra.mxu0 0.0
    %90 = vmatpush.msra.mxu0 0.0
    %91 = vmatpush.msra.mxu0 0.0
    %92 = vmatpush.msra.mxu0 0.0
    %93 = vmatpush.msra.mxu0 0.0
    %94 = vmatpush.msra.mxu0 0.0
    %95 = vmatpush.msra.mxu0 0.0
    %96 = vmatpush.msra.mxu0 %v75
    %97 = vmatpush.msra.mxu0 %v74
    %98 = vmatpush.msra.mxu0 %v73
    %99 = vmatpush.msra.mxu0 %v72
    %100 = vmatmul.f32.gmra.mxu0 %v82
    %v101 = vpop.f32.mrf.mxu0
    %v102 = vadd.f32 %v78, %v101
    %103 = vdwg.mxu0
    %v104 = vmax.f32 %v102, 0.0
    %v105 = vld [vmem:[%s5] sm:$0xff]
    %v106 = vld [vmem:[%s5 + $0x8] sm:$0xff]
    %v107 = vld [vmem:[%s5 + $0x10] sm:$0xff]
    %v108 = vld [vmem:[%s5 + $0x18] sm:$0xff]
    %v109 = vld [vmem:[%s6] sm:$0x1]
    %v111 = vperm.slane %v109, 0
    %v114 = vsel %vm80, %v104, 0
    %116 = vmatpush.msra.mxu0 0.0
    %117 = vmatpush.msra.mxu0 0.0
    %118 = vmatpush.msra.mxu0 0.0
    %119 = vmatpush.msra.mxu0 0.0
    %120 = vmatpush.msra.mxu0 0.0
    %121 = vmatpush.msra.mxu0 0.0
    %122 = vmatpush.msra.mxu0 0.0
    %123 = vmatpush.msra.mxu0 0.0
    %124 = vmatpush.msra.mxu0 0.0
    %125 = vmatpush.msra.mxu0 0.0
    %126 = vmatpush.msra.mxu0 0.0
    %127 = vmatpush.msra.mxu0 0.0
    %128 = vmatpush.msra.mxu0 %v108
    %129 = vmatpush.msra.mxu0 %v107
    %130 = vmatpush.msra.mxu0 %v106
    %131 = vmatpush.msra.mxu0 %v105
    %132 = vmatmul.f32.gmra.mxu0 %v114
    %v133 = vpop.f32.mrf.mxu0
    %v134 = vadd.f32 %v111, %v133
    %135 = vdwg.mxu0
    %v136 = vlaneseq
    %v137 = vand.u32 %v136, 127
    %v138 = vmax.f32 %v134, -20.0
    %v139 = vmin.f32 %v138, 2.0
    %v140 = vmul.f32 %v139, 1.442695
    %v141 = vpow.pop %v140
    %vm142 = vcmp.ge.s32.totalorder %v137, 4
    %v143 = vsel %vm142, %v141, %v134
    %144 = vst.msk [vmem:[#allocation5] sm:$0xff] %vm47, %v143
    // Predicated region
    $region34: #{tpu_custom_call.1} parent=1 // pred_check
      _
    $region35: #{tpu_custom_call.1} parent=1 // pred_check_branch
      %146 = sbr.rel (0) target = $region37
    $region36: #{tpu_custom_call.1} parent=1 // pred_region
      %148 = vsyncadd [#allocation4], 0
      %s150 = sshll.u32 [#allocation5], 4
      %s151 = int_to_ptr.vmem [resolvable:$true] %s150
      %s152 = sshll.u32 %s7, 4
      %s153 = int_to_ptr.hbm [resolvable:$true] %s152
      %155 = dma.vmem_to_hbm [thread:$0]  %s151, 128, %s153, [#allocation4]
    $region37: #{tpu_custom_call.1} parent=1 // pred_fallthru
      _
    // Predicated region
    $region38: #{tpu_custom_call.1} parent=1 // pred_check
      _
    $region39: #{tpu_custom_call.1} parent=1 // pred_check_branch
      %157 = sbr.rel (0) target = $region41
    $region40: #{tpu_custom_call.1} parent=1 // pred_region
      %159 = dma.done [#allocation4], 128
    $region41: #{tpu_custom_call.1} parent=1 // pred_fallthru
      _
    %160 = vsyncpa [#allocation3], 1
    %161 = vsyncpa [#allocation4], 1

</llo_original>
